<compile_context>
chip_gen: v7x
topology: tpu7x:2x2x1
jax: 0.10.0
libtpu: 0.0.40
codegen_flags: <defaults>
</compile_context>

<pallas_src>
import functools

import jax
import jax.numpy as jnp
from jax.experimental import pallas as pl
from jax.experimental.pallas import tpu as pltpu

LEAKY_SLOPE = 0.01   # torch.nn.LeakyReLU default
BN_EPS = 1e-4        # BatchNorm1d(eps=0.0001)


def _fused_gin_kernel(num_layers, latent_dim,
                      x_ref, adj_ref, pool_ref,
                      w1f_ref, w1r_ref, w2_ref, b1_ref, b2_ref,
                      xout_ref, pooled_ref, hcat_ref):
    """Fused forward of all GIN layers (single grid step, whole-array refs)."""
    D = latent_dim
    adj = adj_ref[...]                 # (N, N) bf16, loaded once, reused per layer
    h_bf = x_ref[...]                  # (N, F) bf16

    for l in range(num_layers):        # static unroll: per-layer shapes differ
        w1 = w1f_ref[...] if l == 0 else w1r_ref[l - 1]    # (fin, D) bf16
        w2 = w2_ref[l]                                      # (D, D)  bf16
        b1 = b1_ref[l:l + 1, :]                             # (1, D)  f32
        b2 = b2_ref[l:l + 1, :]                             # (1, D)  f32

        # GraphConv: h = adj @ h  (bf16 operands, f32 MXU accumulation)
        h = jnp.dot(adj, h_bf, preferred_element_type=jnp.float32)

        # nn.Sequential(Linear, LeakyReLU, Linear): bf16 matmuls, f32 accum.
        h = jnp.dot(h.astype(jnp.bfloat16), w1,
                    preferred_element_type=jnp.float32) + b1
        h = jnp.where(h >= 0.0, h, LEAKY_SLOPE * h)
        h = jnp.dot(h.astype(jnp.bfloat16), w2,
                    preferred_element_type=jnp.float32) + b2

        # BatchNorm1d(eps=1e-4, affine=False), training-mode biased batch
        # statistics.  One-pass E[h], E[h^2]; variance clamped at 0 to guard
        # against catastrophic-cancellation NaNs.
        inv_n = 1.0 / h.shape[0]
        mean = jnp.sum(h, axis=0, keepdims=True) * inv_n
        ex2 = jnp.sum(h * h, axis=0, keepdims=True) * inv_n
        var = jnp.maximum(ex2 - mean * mean, 0.0)
        h = (h - mean) * jax.lax.rsqrt(var + BN_EPS)

        # Stage this layer's slab in VMEM scratch; the HBM-visible outputs are
        # produced once, lane-dense, after the loop.
        hcat_ref[:, l * D:(l + 1) * D] = h
        h_bf = h.astype(jnp.bfloat16)  # single cast, reused by next adj @ h

    h_all = hcat_ref[...]                                   # (N, L*D) f32
    xout_ref[...] = h_all                                    # l_enc: one lane-dense store
    pooled_ref[...] = jnp.dot(pool_ref[...], h_all.astype(jnp.bfloat16),
                              preferred_element_type=jnp.float32)   # g_enc


def _padded_vmem_bytes(shape, itemsize):
    """Rough VMEM footprint of one operand: last two dims padded to (8, 128)."""
    shape = tuple(shape)
    if len(shape) == 0:
        shape = (1, 1)
    elif len(shape) == 1:
        shape = (1,) + shape
    lead = 1
    for d in shape[:-2]:
        lead *= int(d)
    rows = -(-int(shape[-2]) // 8) * 8
    cols = -(-int(shape[-1]) // 128) * 128
    return lead * rows * cols * itemsize


def shared_gin_forward(x, adj, batch, params, num_graphs):
    """Returns (g_enc, l_enc) exactly as shared_GIN.forward (training-mode BN)."""
    n_nodes = batch.shape[0]
    if x is None or x.ndim == 1 or x.shape[1] == 0:
        x = jnp.ones((n_nodes, 1), jnp.float32)

    num_layers = len(params)
    D = params[0][0].shape[1]
    W = num_layers * D          # concatenated output width (lane-dense when %128==0)
    N = n_nodes
    F = x.shape[1]
    G = num_graphs

    # One-hot pooling matrix (G, N) and adjacency in bf16 (0/1/2 values exact)
    # -> halves the dominant operand's HBM/VMEM bytes.
    pool = (batch[None, :] == jnp.arange(num_graphs)[:, None]).astype(jnp.bfloat16)
    adj_bf16 = adj.astype(jnp.bfloat16)
    x_bf16 = x.astype(jnp.bfloat16)

    # Pack per-layer weights into a few stacked operands (fewer DMA
    # descriptors and less (8,128) tile-padding waste than 4*L tiny args).
    w1_first = params[0][0].astype(jnp.bfloat16)                        # (F, D)
    if num_layers > 1:
        w1_rest = jnp.stack([params[l][0] for l in range(1, num_layers)]
                            ).astype(jnp.bfloat16)                      # (L-1, D, D)
    else:
        w1_rest = jnp.zeros((1, D, D), jnp.bfloat16)                    # dummy, never read
    w2_all = jnp.stack([p[2] for p in params]).astype(jnp.bfloat16)     # (L, D, D)
    b1_all = jnp.stack([p[1].reshape(-1) for p in params])              # (L, D) f32
    b2_all = jnp.stack([p[3].reshape(-1) for p in params])              # (L, D) f32

    # Advisory cost estimate for the XLA scheduler.
    flops = 0
    for i in range(num_layers):
        fin = F if i == 0 else D
        flops += (2 * N * N * fin      # adj @ h
                  + 2 * N * fin * D    # h @ W1
                  + 2 * N * D * D      # h @ W2
                  + 8 * N * D)         # LeakyReLU + BN elementwise
    flops += 2 * G * N * W             # single pooling matmul on the concat slab

    operands = (x_bf16, adj_bf16, pool, w1_first, w1_rest, w2_all, b1_all, b2_all)
    bytes_accessed = int(sum(a.size * a.dtype.itemsize for a in operands)
                         + N * W * 4 + G * W * 4)

    # VMEM budget from the actual footprint (operands + outputs + concat
    # scratch), 2x headroom, capped at 56 MiB so it also fits v7x (64 MiB).
    footprint = sum(_padded_vmem_bytes(a.shape, a.dtype.itemsize) for a in operands)
    footprint += 2 * _padded_vmem_bytes((N, W), 4)     # l_enc out + concat scratch
    footprint += _padded_vmem_bytes((G, W), 4)         # g_enc out
    vmem_limit = int(min(max(2 * footprint + (2 << 20), 4 << 20), 56 << 20))

    kernel = functools.partial(_fused_gin_kernel, num_layers, D)

    xout, pooled = pl.pallas_call(
        kernel,
        out_shape=(
            jax.ShapeDtypeStruct((N, W), jnp.float32),   # l_enc
            jax.ShapeDtypeStruct((G, W), jnp.float32),   # g_enc
        ),
        # No grid: single-step kernel, whole arrays resident in VMEM, no
        # pointless double-buffering of the adjacency.
        scratch_shapes=[pltpu.VMEM((N, W), jnp.float32)],
        compiler_params=pltpu.CompilerParams(vmem_limit_bytes=vmem_limit),
        cost_estimate=pl.CostEstimate(
            flops=int(flops),
            transcendentals=int(num_layers * D),   # rsqrt per BN column
            bytes_accessed=bytes_accessed),
    )(x_bf16, adj_bf16, pool, w1_first, w1_rest, w2_all, b1_all, b2_all)

    g_enc = pooled
    l_enc = xout
    return g_enc, l_enc


# ----------------------------------------------------------------------------- params

def xavier_uniform(key, fan_in, fan_out):
    bound = (6.0 / (fan_in + fan_out)) ** 0.5
    return jax.random.uniform(key, (fan_in, fan_out), jnp.float32, -bound, bound)


def torch_bias_init(key, fan_in, fan_out):
    bound = 1.0 / (fan_in ** 0.5)
    return jax.random.uniform(key, (1, fan_out), jnp.float32, -bound, bound)


def make_params(key, num_features, latent_dim, num_gc_layers):
    params = []
    for i in range(num_gc_layers):
        fin = num_features if i == 0 else latent_dim
        key, k1, k2, k3, k4 = jax.random.split(key, 5)
        w1 = xavier_uniform(k1, fin, latent_dim)
        b1 = torch_bias_init(k2, fin, latent_dim)
        w2 = xavier_uniform(k3, latent_dim, latent_dim)
        b2 = torch_bias_init(k4, latent_dim, latent_dim)
        params.append((w1, b1, w2, b2))
    return params


# ----------------------------------------------------------------------------- demo

if __name__ == "__main__":
    key = jax.random.PRNGKey(0)

    num_nodes = 16
    num_features = 8
    latent_dim = 32
    num_gc_layers = 4          # 4 * 32 = 128 -> lane-dense concatenated outputs
    num_graphs = 2

    key, kx, ka = jax.random.split(key, 3)
    x = jax.random.normal(kx, (num_nodes, num_features), jnp.float32)
    # dense adjacency with self-loops (0/1/2-valued -> exact in bf16)
    adj_rand = (jax.random.uniform(ka, (num_nodes, num_nodes)) > 0.7).astype(jnp.float32)
    adj = jnp.maximum(adj_rand, adj_rand.T) + jnp.eye(num_nodes, dtype=jnp.float32)
    # first half of nodes -> graph 0, second half -> graph 1
    batch = jnp.concatenate([jnp.zeros(num_nodes // 2, jnp.int32),
                             jnp.ones(num_nodes - num_nodes // 2, jnp.int32)])

    params = make_params(key, num_features, latent_dim, num_gc_layers)

    fwd = jax.jit(functools.partial(shared_gin_forward, num_graphs=num_graphs))
    g_enc, l_enc = fwd(x, adj, batch, params)
    jax.block_until_ready((g_enc, l_enc))

    assert g_enc.shape == (num_graphs, latent_dim * num_gc_layers)
    assert l_enc.shape == (num_nodes, latent_dim * num_gc_layers)
    assert bool(jnp.all(jnp.isfinite(g_enc))) and bool(jnp.all(jnp.isfinite(l_enc)))
    print("KERNEL_OK")
</pallas_src>

<mosaic_0001>
module attributes {stable_mosaic.version = 11 : i64} {
  func.func @_fused_gin_kernel(%arg0: memref<16x8xbf16, #tpu.memory_space<vmem>>, %arg1: memref<16x16xbf16, #tpu.memory_space<vmem>>, %arg2: memref<2x16xbf16, #tpu.memory_space<vmem>>, %arg3: memref<8x32xbf16, #tpu.memory_space<vmem>>, %arg4: memref<3x32x32xbf16, #tpu.memory_space<vmem>>, %arg5: memref<4x32x32xbf16, #tpu.memory_space<vmem>>, %arg6: memref<4x32xf32, #tpu.memory_space<vmem>>, %arg7: memref<4x32xf32, #tpu.memory_space<vmem>>, %arg8: memref<16x128xf32, #tpu.memory_space<vmem>>, %arg9: memref<2x128xf32, #tpu.memory_space<vmem>>, %arg10: memref<16x128xf32, #tpu.memory_space<vmem>>) attributes {dimension_semantics = [], scalar_prefetch = 0 : i64, scratch_operands = 1 : i64, tpu.core_type = #tpu.core_type<tc>} {
    %c0 = arith.constant 0 : index
    %c0_0 = arith.constant 0 : index
    %0 = vector.load %arg1[%c0, %c0_0] : memref<16x16xbf16, #tpu.memory_space<vmem>>, vector<16x16xbf16>
    %c0_1 = arith.constant 0 : index
    %c0_2 = arith.constant 0 : index
    %1 = vector.load %arg0[%c0_1, %c0_2] : memref<16x8xbf16, #tpu.memory_space<vmem>>, vector<16x8xbf16>
    %c0_3 = arith.constant 0 : index
    %c0_4 = arith.constant 0 : index
    %2 = vector.load %arg3[%c0_3, %c0_4] : memref<8x32xbf16, #tpu.memory_space<vmem>>, vector<8x32xbf16>
    %c0_5 = arith.constant 0 : index
    %c0_6 = arith.constant 0 : index
    %c0_7 = arith.constant 0 : index
    %3 = vector.load %arg5[%c0_5, %c0_6, %c0_7] : memref<4x32x32xbf16, #tpu.memory_space<vmem>>, vector<1x32x32xbf16>
    %4 = vector.shape_cast %3 : vector<1x32x32xbf16> to vector<32x32xbf16>
    %c0_8 = arith.constant 0 : index
    %c0_9 = arith.constant 0 : index
    %5 = vector.load %arg6[%c0_8, %c0_9] : memref<4x32xf32, #tpu.memory_space<vmem>>, vector<1x32xf32>
    %c0_10 = arith.constant 0 : index
    %c0_11 = arith.constant 0 : index
    %6 = vector.load %arg7[%c0_10, %c0_11] : memref<4x32xf32, #tpu.memory_space<vmem>>, vector<1x32xf32>
    %cst = arith.constant dense<0.000000e+00> : vector<16x8xf32>
    %7 = tpu.matmul %0, %1, %cst {dimension_numbers = #tpu.dot_dimension_numbers<[1], [0], [0], [1], [0, 0, 1, 1], [], []>} : vector<16x16xbf16>, vector<16x8xbf16>, vector<16x8xf32> -> vector<16x8xf32>
    %8 = arith.truncf %7 : vector<16x8xf32> to vector<16x8xbf16>
    %cst_12 = arith.constant dense<0.000000e+00> : vector<16x32xf32>
    %9 = tpu.matmul %8, %2, %cst_12 {dimension_numbers = #tpu.dot_dimension_numbers<[1], [0], [0], [1], [0, 0, 1, 1], [], []>} : vector<16x8xbf16>, vector<8x32xbf16>, vector<16x32xf32> -> vector<16x32xf32>
    %10 = vector.broadcast %5 : vector<1x32xf32> to vector<16x32xf32>
    %11 = arith.addf %9, %10 : vector<16x32xf32>
    %cst_13 = arith.constant 0.000000e+00 : f32
    %12 = vector.broadcast %cst_13 : f32 to vector<16x32xf32>
    %13 = arith.cmpf oge, %11, %12 : vector<16x32xf32>
    %cst_14 = arith.constant 0.00999999977 : f32
    %14 = vector.broadcast %cst_14 : f32 to vector<16x32xf32>
    %15 = arith.mulf %14, %11 : vector<16x32xf32>
    %16 = arith.select %13, %11, %15 : vector<16x32xi1>, vector<16x32xf32>
    %17 = arith.truncf %16 : vector<16x32xf32> to vector<16x32xbf16>
    %cst_15 = arith.constant dense<0.000000e+00> : vector<16x32xf32>
    %18 = tpu.matmul %17, %4, %cst_15 {dimension_numbers = #tpu.dot_dimension_numbers<[1], [0], [0], [1], [0, 0, 1, 1], [], []>} : vector<16x32xbf16>, vector<32x32xbf16>, vector<16x32xf32> -> vector<16x32xf32>
    %19 = vector.broadcast %6 : vector<1x32xf32> to vector<16x32xf32>
    %20 = arith.addf %18, %19 : vector<16x32xf32>
    %cst_16 = arith.constant dense<0.000000e+00> : vector<32xf32>
    %21 = vector.multi_reduction <add>, %20, %cst_16 [0] : vector<16x32xf32> to vector<32xf32>
    %22 = vector.shape_cast %21 : vector<32xf32> to vector<1x32xf32>
    %cst_17 = arith.constant 6.250000e-02 : f32
    %23 = vector.broadcast %cst_17 : f32 to vector<1x32xf32>
    %24 = arith.mulf %22, %23 : vector<1x32xf32>
    %25 = arith.mulf %20, %20 : vector<16x32xf32>
    %cst_18 = arith.constant dense<0.000000e+00> : vector<32xf32>
    %26 = vector.multi_reduction <add>, %25, %cst_18 [0] : vector<16x32xf32> to vector<32xf32>
    %27 = vector.shape_cast %26 : vector<32xf32> to vector<1x32xf32>
    %cst_19 = arith.constant 6.250000e-02 : f32
    %28 = vector.broadcast %cst_19 : f32 to vector<1x32xf32>
    %29 = arith.mulf %27, %28 : vector<1x32xf32>
    %30 = arith.mulf %24, %24 : vector<1x32xf32>
    %31 = arith.subf %29, %30 : vector<1x32xf32>
    %cst_20 = arith.constant 0.000000e+00 : f32
    %32 = vector.broadcast %cst_20 : f32 to vector<1x32xf32>
    %33 = arith.maximumf %31, %32 : vector<1x32xf32>
    %34 = vector.broadcast %24 : vector<1x32xf32> to vector<16x32xf32>
    %35 = arith.subf %20, %34 : vector<16x32xf32>
    %cst_21 = arith.constant 9.99999974E-5 : f32
    %36 = vector.broadcast %cst_21 : f32 to vector<1x32xf32>
    %37 = arith.addf %33, %36 : vector<1x32xf32>
    %38 = math.rsqrt %37 : vector<1x32xf32>
    %39 = vector.broadcast %38 : vector<1x32xf32> to vector<16x32xf32>
    %40 = arith.mulf %35, %39 : vector<16x32xf32>
    %c0_22 = arith.constant 0 : index
    %c0_23 = arith.constant 0 : index
    %41 = vector.load %arg10[%c0_22, %c0_23] : memref<16x128xf32, #tpu.memory_space<vmem>>, vector<16x32xf32>
    tpu.vector_store %arg10[%c0_22, %c0_23], %40 {strides = array<i32>} : memref<16x128xf32, #tpu.memory_space<vmem>>, vector<16x32xf32>,
    %42 = arith.truncf %40 : vector<16x32xf32> to vector<16x32xbf16>
    %c0_24 = arith.constant 0 : index
    %c0_25 = arith.constant 0 : index
    %c0_26 = arith.constant 0 : index
    %43 = vector.load %arg4[%c0_24, %c0_25, %c0_26] : memref<3x32x32xbf16, #tpu.memory_space<vmem>>, vector<1x32x32xbf16>
    %44 = vector.shape_cast %43 : vector<1x32x32xbf16> to vector<32x32xbf16>
    %c1 = arith.constant 1 : index
    %c0_27 = arith.constant 0 : index
    %c0_28 = arith.constant 0 : index
    %45 = vector.load %arg5[%c1, %c0_27, %c0_28] : memref<4x32x32xbf16, #tpu.memory_space<vmem>>, vector<1x32x32xbf16>
    %46 = vector.shape_cast %45 : vector<1x32x32xbf16> to vector<32x32xbf16>
    %c1_29 = arith.constant 1 : index
    %c0_30 = arith.constant 0 : index
    %47 = vector.load %arg6[%c1_29, %c0_30] : memref<4x32xf32, #tpu.memory_space<vmem>>, vector<1x32xf32>
    %c1_31 = arith.constant 1 : index
    %c0_32 = arith.constant 0 : index
    %48 = vector.load %arg7[%c1_31, %c0_32] : memref<4x32xf32, #tpu.memory_space<vmem>>, vector<1x32xf32>
    %cst_33 = arith.constant dense<0.000000e+00> : vector<16x32xf32>
    %49 = tpu.matmul %0, %42, %cst_33 {dimension_numbers = #tpu.dot_dimension_numbers<[1], [0], [0], [1], [0, 0, 1, 1], [], []>} : vector<16x16xbf16>, vector<16x32xbf16>, vector<16x32xf32> -> vector<16x32xf32>
    %50 = arith.truncf %49 : vector<16x32xf32> to vector<16x32xbf16>
    %cst_34 = arith.constant dense<0.000000e+00> : vector<16x32xf32>
    %51 = tpu.matmul %50, %44, %cst_34 {dimension_numbers = #tpu.dot_dimension_numbers<[1], [0], [0], [1], [0, 0, 1, 1], [], []>} : vector<16x32xbf16>, vector<32x32xbf16>, vector<16x32xf32> -> vector<16x32xf32>
    %52 = vector.broadcast %47 : vector<1x32xf32> to vector<16x32xf32>
    %53 = arith.addf %51, %52 : vector<16x32xf32>
    %cst_35 = arith.constant 0.000000e+00 : f32
    %54 = vector.broadcast %cst_35 : f32 to vector<16x32xf32>
    %55 = arith.cmpf oge, %53, %54 : vector<16x32xf32>
    %cst_36 = arith.constant 0.00999999977 : f32
    %56 = vector.broadcast %cst_36 : f32 to vector<16x32xf32>
    %57 = arith.mulf %56, %53 : vector<16x32xf32>
    %58 = arith.select %55, %53, %57 : vector<16x32xi1>, vector<16x32xf32>
    %59 = arith.truncf %58 : vector<16x32xf32> to vector<16x32xbf16>
    %cst_37 = arith.constant dense<0.000000e+00> : vector<16x32xf32>
    %60 = tpu.matmul %59, %46, %cst_37 {dimension_numbers = #tpu.dot_dimension_numbers<[1], [0], [0], [1], [0, 0, 1, 1], [], []>} : vector<16x32xbf16>, vector<32x32xbf16>, vector<16x32xf32> -> vector<16x32xf32>
    %61 = vector.broadcast %48 : vector<1x32xf32> to vector<16x32xf32>
    %62 = arith.addf %60, %61 : vector<16x32xf32>
    %cst_38 = arith.constant dense<0.000000e+00> : vector<32xf32>
    %63 = vector.multi_reduction <add>, %62, %cst_38 [0] : vector<16x32xf32> to vector<32xf32>
    %64 = vector.shape_cast %63 : vector<32xf32> to vector<1x32xf32>
    %cst_39 = arith.constant 6.250000e-02 : f32
    %65 = vector.broadcast %cst_39 : f32 to vector<1x32xf32>
    %66 = arith.mulf %64, %65 : vector<1x32xf32>
    %67 = arith.mulf %62, %62 : vector<16x32xf32>
    %cst_40 = arith.constant dense<0.000000e+00> : vector<32xf32>
    %68 = vector.multi_reduction <add>, %67, %cst_40 [0] : vector<16x32xf32> to vector<32xf32>
    %69 = vector.shape_cast %68 : vector<32xf32> to vector<1x32xf32>
    %cst_41 = arith.constant 6.250000e-02 : f32
    %70 = vector.broadcast %cst_41 : f32 to vector<1x32xf32>
    %71 = arith.mulf %69, %70 : vector<1x32xf32>
    %72 = arith.mulf %66, %66 : vector<1x32xf32>
    %73 = arith.subf %71, %72 : vector<1x32xf32>
    %cst_42 = arith.constant 0.000000e+00 : f32
    %74 = vector.broadcast %cst_42 : f32 to vector<1x32xf32>
    %75 = arith.maximumf %73, %74 : vector<1x32xf32>
    %76 = vector.broadcast %66 : vector<1x32xf32> to vector<16x32xf32>
    %77 = arith.subf %62, %76 : vector<16x32xf32>
    %cst_43 = arith.constant 9.99999974E-5 : f32
    %78 = vector.broadcast %cst_43 : f32 to vector<1x32xf32>
    %79 = arith.addf %75, %78 : vector<1x32xf32>
    %80 = math.rsqrt %79 : vector<1x32xf32>
    %81 = vector.broadcast %80 : vector<1x32xf32> to vector<16x32xf32>
    %82 = arith.mulf %77, %81 : vector<16x32xf32>
    %c0_44 = arith.constant 0 : index
    %c32 = arith.constant 32 : index
    %83 = vector.load %arg10[%c0_44, %c32] : memref<16x128xf32, #tpu.memory_space<vmem>>, vector<16x32xf32>
    tpu.vector_store %arg10[%c0_44, %c32], %82 {strides = array<i32>} : memref<16x128xf32, #tpu.memory_space<vmem>>, vector<16x32xf32>,
    %84 = arith.truncf %82 : vector<16x32xf32> to vector<16x32xbf16>
    %c1_45 = arith.constant 1 : index
    %c0_46 = arith.constant 0 : index
    %c0_47 = arith.constant 0 : index
    %85 = vector.load %arg4[%c1_45, %c0_46, %c0_47] : memref<3x32x32xbf16, #tpu.memory_space<vmem>>, vector<1x32x32xbf16>
    %86 = vector.shape_cast %85 : vector<1x32x32xbf16> to vector<32x32xbf16>
    %c2 = arith.constant 2 : index
    %c0_48 = arith.constant 0 : index
    %c0_49 = arith.constant 0 : index
    %87 = vector.load %arg5[%c2, %c0_48, %c0_49] : memref<4x32x32xbf16, #tpu.memory_space<vmem>>, vector<1x32x32xbf16>
    %88 = vector.shape_cast %87 : vector<1x32x32xbf16> to vector<32x32xbf16>
    %c2_50 = arith.constant 2 : index
    %c0_51 = arith.constant 0 : index
    %89 = vector.load %arg6[%c2_50, %c0_51] : memref<4x32xf32, #tpu.memory_space<vmem>>, vector<1x32xf32>
    %c2_52 = arith.constant 2 : index
    %c0_53 = arith.constant 0 : index
    %90 = vector.load %arg7[%c2_52, %c0_53] : memref<4x32xf32, #tpu.memory_space<vmem>>, vector<1x32xf32>
    %cst_54 = arith.constant dense<0.000000e+00> : vector<16x32xf32>
    %91 = tpu.matmul %0, %84, %cst_54 {dimension_numbers = #tpu.dot_dimension_numbers<[1], [0], [0], [1], [0, 0, 1, 1], [], []>} : vector<16x16xbf16>, vector<16x32xbf16>, vector<16x32xf32> -> vector<16x32xf32>
    %92 = arith.truncf %91 : vector<16x32xf32> to vector<16x32xbf16>
    %cst_55 = arith.constant dense<0.000000e+00> : vector<16x32xf32>
    %93 = tpu.matmul %92, %86, %cst_55 {dimension_numbers = #tpu.dot_dimension_numbers<[1], [0], [0], [1], [0, 0, 1, 1], [], []>} : vector<16x32xbf16>, vector<32x32xbf16>, vector<16x32xf32> -> vector<16x32xf32>
    %94 = vector.broadcast %89 : vector<1x32xf32> to vector<16x32xf32>
    %95 = arith.addf %93, %94 : vector<16x32xf32>
    %cst_56 = arith.constant 0.000000e+00 : f32
    %96 = vector.broadcast %cst_56 : f32 to vector<16x32xf32>
    %97 = arith.cmpf oge, %95, %96 : vector<16x32xf32>
    %cst_57 = arith.constant 0.00999999977 : f32
    %98 = vector.broadcast %cst_57 : f32 to vector<16x32xf32>
    %99 = arith.mulf %98, %95 : vector<16x32xf32>
    %100 = arith.select %97, %95, %99 : vector<16x32xi1>, vector<16x32xf32>
    %101 = arith.truncf %100 : vector<16x32xf32> to vector<16x32xbf16>
    %cst_58 = arith.constant dense<0.000000e+00> : vector<16x32xf32>
    %102 = tpu.matmul %101, %88, %cst_58 {dimension_numbers = #tpu.dot_dimension_numbers<[1], [0], [0], [1], [0, 0, 1, 1], [], []>} : vector<16x32xbf16>, vector<32x32xbf16>, vector<16x32xf32> -> vector<16x32xf32>
    %103 = vector.broadcast %90 : vector<1x32xf32> to vector<16x32xf32>
    %104 = arith.addf %102, %103 : vector<16x32xf32>
    %cst_59 = arith.constant dense<0.000000e+00> : vector<32xf32>
    %105 = vector.multi_reduction <add>, %104, %cst_59 [0] : vector<16x32xf32> to vector<32xf32>
    %106 = vector.shape_cast %105 : vector<32xf32> to vector<1x32xf32>
    %cst_60 = arith.constant 6.250000e-02 : f32
    %107 = vector.broadcast %cst_60 : f32 to vector<1x32xf32>
    %108 = arith.mulf %106, %107 : vector<1x32xf32>
    %109 = arith.mulf %104, %104 : vector<16x32xf32>
    %cst_61 = arith.constant dense<0.000000e+00> : vector<32xf32>
    %110 = vector.multi_reduction <add>, %109, %cst_61 [0] : vector<16x32xf32> to vector<32xf32>
    %111 = vector.shape_cast %110 : vector<32xf32> to vector<1x32xf32>
    %cst_62 = arith.constant 6.250000e-02 : f32
    %112 = vector.broadcast %cst_62 : f32 to vector<1x32xf32>
    %113 = arith.mulf %111, %112 : vector<1x32xf32>
    %114 = arith.mulf %108, %108 : vector<1x32xf32>
    %115 = arith.subf %113, %114 : vector<1x32xf32>
    %cst_63 = arith.constant 0.000000e+00 : f32
    %116 = vector.broadcast %cst_63 : f32 to vector<1x32xf32>
    %117 = arith.maximumf %115, %116 : vector<1x32xf32>
    %118 = vector.broadcast %108 : vector<1x32xf32> to vector<16x32xf32>
    %119 = arith.subf %104, %118 : vector<16x32xf32>
    %cst_64 = arith.constant 9.99999974E-5 : f32
    %120 = vector.broadcast %cst_64 : f32 to vector<1x32xf32>
    %121 = arith.addf %117, %120 : vector<1x32xf32>
    %122 = math.rsqrt %121 : vector<1x32xf32>
    %123 = vector.broadcast %122 : vector<1x32xf32> to vector<16x32xf32>
    %124 = arith.mulf %119, %123 : vector<16x32xf32>
    %c0_65 = arith.constant 0 : index
    %c64 = arith.constant 64 : index
    %125 = vector.load %arg10[%c0_65, %c64] : memref<16x128xf32, #tpu.memory_space<vmem>>, vector<16x32xf32>
    tpu.vector_store %arg10[%c0_65, %c64], %124 {strides = array<i32>} : memref<16x128xf32, #tpu.memory_space<vmem>>, vector<16x32xf32>,
    %126 = arith.truncf %124 : vector<16x32xf32> to vector<16x32xbf16>
    %c2_66 = arith.constant 2 : index
    %c0_67 = arith.constant 0 : index
    %c0_68 = arith.constant 0 : index
    %127 = vector.load %arg4[%c2_66, %c0_67, %c0_68] : memref<3x32x32xbf16, #tpu.memory_space<vmem>>, vector<1x32x32xbf16>
    %128 = vector.shape_cast %127 : vector<1x32x32xbf16> to vector<32x32xbf16>
    %c3 = arith.constant 3 : index
    %c0_69 = arith.constant 0 : index
    %c0_70 = arith.constant 0 : index
    %129 = vector.load %arg5[%c3, %c0_69, %c0_70] : memref<4x32x32xbf16, #tpu.memory_space<vmem>>, vector<1x32x32xbf16>
    %130 = vector.shape_cast %129 : vector<1x32x32xbf16> to vector<32x32xbf16>
    %c3_71 = arith.constant 3 : index
    %c0_72 = arith.constant 0 : index
    %131 = vector.load %arg6[%c3_71, %c0_72] : memref<4x32xf32, #tpu.memory_space<vmem>>, vector<1x32xf32>
    %c3_73 = arith.constant 3 : index
    %c0_74 = arith.constant 0 : index
    %132 = vector.load %arg7[%c3_73, %c0_74] : memref<4x32xf32, #tpu.memory_space<vmem>>, vector<1x32xf32>
    %cst_75 = arith.constant dense<0.000000e+00> : vector<16x32xf32>
    %133 = tpu.matmul %0, %126, %cst_75 {dimension_numbers = #tpu.dot_dimension_numbers<[1], [0], [0], [1], [0, 0, 1, 1], [], []>} : vector<16x16xbf16>, vector<16x32xbf16>, vector<16x32xf32> -> vector<16x32xf32>
    %134 = arith.truncf %133 : vector<16x32xf32> to vector<16x32xbf16>
    %cst_76 = arith.constant dense<0.000000e+00> : vector<16x32xf32>
    %135 = tpu.matmul %134, %128, %cst_76 {dimension_numbers = #tpu.dot_dimension_numbers<[1], [0], [0], [1], [0, 0, 1, 1], [], []>} : vector<16x32xbf16>, vector<32x32xbf16>, vector<16x32xf32> -> vector<16x32xf32>
    %136 = vector.broadcast %131 : vector<1x32xf32> to vector<16x32xf32>
    %137 = arith.addf %135, %136 : vector<16x32xf32>
    %cst_77 = arith.constant 0.000000e+00 : f32
    %138 = vector.broadcast %cst_77 : f32 to vector<16x32xf32>
    %139 = arith.cmpf oge, %137, %138 : vector<16x32xf32>
    %cst_78 = arith.constant 0.00999999977 : f32
    %140 = vector.broadcast %cst_78 : f32 to vector<16x32xf32>
    %141 = arith.mulf %140, %137 : vector<16x32xf32>
    %142 = arith.select %139, %137, %141 : vector<16x32xi1>, vector<16x32xf32>
    %143 = arith.truncf %142 : vector<16x32xf32> to vector<16x32xbf16>
    %cst_79 = arith.constant dense<0.000000e+00> : vector<16x32xf32>
    %144 = tpu.matmul %143, %130, %cst_79 {dimension_numbers = #tpu.dot_dimension_numbers<[1], [0], [0], [1], [0, 0, 1, 1], [], []>} : vector<16x32xbf16>, vector<32x32xbf16>, vector<16x32xf32> -> vector<16x32xf32>
    %145 = vector.broadcast %132 : vector<1x32xf32> to vector<16x32xf32>
    %146 = arith.addf %144, %145 : vector<16x32xf32>
    %cst_80 = arith.constant dense<0.000000e+00> : vector<32xf32>
    %147 = vector.multi_reduction <add>, %146, %cst_80 [0] : vector<16x32xf32> to vector<32xf32>
    %148 = vector.shape_cast %147 : vector<32xf32> to vector<1x32xf32>
    %cst_81 = arith.constant 6.250000e-02 : f32
    %149 = vector.broadcast %cst_81 : f32 to vector<1x32xf32>
    %150 = arith.mulf %148, %149 : vector<1x32xf32>
    %151 = arith.mulf %146, %146 : vector<16x32xf32>
    %cst_82 = arith.constant dense<0.000000e+00> : vector<32xf32>
    %152 = vector.multi_reduction <add>, %151, %cst_82 [0] : vector<16x32xf32> to vector<32xf32>
    %153 = vector.shape_cast %152 : vector<32xf32> to vector<1x32xf32>
    %cst_83 = arith.constant 6.250000e-02 : f32
    %154 = vector.broadcast %cst_83 : f32 to vector<1x32xf32>
    %155 = arith.mulf %153, %154 : vector<1x32xf32>
    %156 = arith.mulf %150, %150 : vector<1x32xf32>
    %157 = arith.subf %155, %156 : vector<1x32xf32>
    %cst_84 = arith.constant 0.000000e+00 : f32
    %158 = vector.broadcast %cst_84 : f32 to vector<1x32xf32>
    %159 = arith.maximumf %157, %158 : vector<1x32xf32>
    %160 = vector.broadcast %150 : vector<1x32xf32> to vector<16x32xf32>
    %161 = arith.subf %146, %160 : vector<16x32xf32>
    %cst_85 = arith.constant 9.99999974E-5 : f32
    %162 = vector.broadcast %cst_85 : f32 to vector<1x32xf32>
    %163 = arith.addf %159, %162 : vector<1x32xf32>
    %164 = math.rsqrt %163 : vector<1x32xf32>
    %165 = vector.broadcast %164 : vector<1x32xf32> to vector<16x32xf32>
    %166 = arith.mulf %161, %165 : vector<16x32xf32>
    %c0_86 = arith.constant 0 : index
    %c96 = arith.constant 96 : index
    %167 = vector.load %arg10[%c0_86, %c96] : memref<16x128xf32, #tpu.memory_space<vmem>>, vector<16x32xf32>
    tpu.vector_store %arg10[%c0_86, %c96], %166 {strides = array<i32>} : memref<16x128xf32, #tpu.memory_space<vmem>>, vector<16x32xf32>,
    %c0_87 = arith.constant 0 : index
    %c0_88 = arith.constant 0 : index
    %168 = vector.load %arg10[%c0_87, %c0_88] : memref<16x128xf32, #tpu.memory_space<vmem>>, vector<16x128xf32>
    %c0_89 = arith.constant 0 : index
    %c0_90 = arith.constant 0 : index
    %169 = vector.load %arg8[%c0_89, %c0_90] : memref<16x128xf32, #tpu.memory_space<vmem>>, vector<16x128xf32>
    tpu.vector_store %arg8[%c0_89, %c0_90], %168 {strides = array<i32>} : memref<16x128xf32, #tpu.memory_space<vmem>>, vector<16x128xf32>,
    %c0_91 = arith.constant 0 : index
    %c0_92 = arith.constant 0 : index
    %170 = vector.load %arg2[%c0_91, %c0_92] : memref<2x16xbf16, #tpu.memory_space<vmem>>, vector<2x16xbf16>
    %171 = arith.truncf %168 : vector<16x128xf32> to vector<16x128xbf16>
    %cst_93 = arith.constant dense<0.000000e+00> : vector<2x128xf32>
    %172 = tpu.matmul %170, %171, %cst_93 {dimension_numbers = #tpu.dot_dimension_numbers<[1], [0], [0], [1], [0, 0, 1, 1], [], []>} : vector<2x16xbf16>, vector<16x128xbf16>, vector<2x128xf32> -> vector<2x128xf32>
    %c0_94 = arith.constant 0 : index
    %c0_95 = arith.constant 0 : index
    %173 = vector.load %arg9[%c0_94, %c0_95] : memref<2x128xf32, #tpu.memory_space<vmem>>, vector<2x128xf32>
    tpu.vector_store %arg9[%c0_94, %c0_95], %172 {strides = array<i32>} : memref<2x128xf32, #tpu.memory_space<vmem>>, vector<2x128xf32>,
    return
  }
}

</mosaic_0001>

<llo_original>
// kernel: shared_gin_forward.1
$region0: #{shared_gin_forward.1}
  #allocation0 [shape = 'u32[]', space=smem, size = 0x4, offset = 0x4, fixed_abs, tag = 'smem constant byte address 0x4 - core index']
  #allocation1 [shape = 'u32[144,128]{1,0:T(1,128)}', space=vmem, size = 0x12000, scoped, tag = 'internal scratch']
  #allocation2 [shape = 'f32[16,128]{1,0:T(8,128)}', space=vmem, size = 0x2000, scoped, tag = 'scratch operand']
  %s0 = inlined_call_operand.vmem [shape: bf16[16,8], index: 0, kind: input, shape index: {}]
  %s1 = inlined_call_operand.vmem [shape: bf16[16,16], index: 1, kind: input, shape index: {}]
  %s2 = inlined_call_operand.vmem [shape: bf16[2,16], index: 2, kind: input, shape index: {}]
  %s3 = inlined_call_operand.vmem [shape: bf16[8,32], index: 3, kind: input, shape index: {}]
  %s4 = inlined_call_operand.vmem [shape: bf16[3,32,32], index: 4, kind: input, shape index: {}]
  %s5 = inlined_call_operand.vmem [shape: bf16[4,32,32], index: 5, kind: input, shape index: {}]
  %s6 = inlined_call_operand.vmem [shape: f32[4,32], index: 6, kind: input, shape index: {}]
  %s7 = inlined_call_operand.vmem [shape: f32[4,32], index: 7, kind: input, shape index: {}]
  %s8 = inlined_call_operand.hbm [shape: f32[16,128], index: 8, kind: output, shape index: {0}]
  %s9 = inlined_call_operand.hbm [shape: f32[2,128], index: 9, kind: output, shape index: {1}]
  %10 = xla_tuple %s8, %s9
  %s11 = sld [smem:[#allocation0]]
  $region50: #{shared_gin_forward.1} parent=0
    _
  %s13 = ssub.s32 1, %s11
  %s14 = scalar_select 0, %s13, %s11
  $region1: #{shared_gin_forward.1} parent=0
    #allocation3 [shape = 'u8[8192]{0}', space=vmem, size = 0x2000, scoped, tag = 'output window, operand 0, single buffered']
    #allocation4 [shape = 's32[1]{0}', space=sflag, size = 0x4, scoped, tag = 'scoped memory for shared_gin_forward.1']
    #allocation5 [shape = 'u8[1024]{0}', space=vmem, size = 0x400, scoped, tag = 'output window, operand 1, single buffered']
    #allocation6 [shape = 's32[1]{0}', space=sflag, size = 0x4, scoped, tag = 'scoped memory for shared_gin_forward.1']
    %15 = vsyncpa [#allocation4], 0
    %16 = vsyncpa [#allocation6], 0
    // Predicated region
    $region2: #{shared_gin_forward.1} parent=1 // pred_check
      _
    $region3: #{shared_gin_forward.1} parent=1 // pred_check_branch
      %18 = sbr.rel (0) target = $region5
    $region4: #{shared_gin_forward.1} parent=1 // pred_region
      _
    $region5: #{shared_gin_forward.1} parent=1 // pred_fallthru
      _
    // Predicated region
    $region6: #{shared_gin_forward.1} parent=1 // pred_check
      _
    $region7: #{shared_gin_forward.1} parent=1 // pred_check_branch
      %20 = sbr.rel (0) target = $region9
    $region8: #{shared_gin_forward.1} parent=1 // pred_region
      _
    $region9: #{shared_gin_forward.1} parent=1 // pred_fallthru
      _
    // Predicated region
    $region10: #{shared_gin_forward.1} parent=1 // pred_check
      _
    $region11: #{shared_gin_forward.1} parent=1 // pred_check_branch
      %22 = sbr.rel (0) target = $region13
    $region12: #{shared_gin_forward.1} parent=1 // pred_region
      _
    $region13: #{shared_gin_forward.1} parent=1 // pred_fallthru
      _
    // Predicated region
    $region14: #{shared_gin_forward.1} parent=1 // pred_check
      _
    $region15: #{shared_gin_forward.1} parent=1 // pred_check_branch
      %24 = sbr.rel (0) target = $region17
    $region16: #{shared_gin_forward.1} parent=1 // pred_region
      _
    $region17: #{shared_gin_forward.1} parent=1 // pred_fallthru
      _
    // Predicated region
    $region18: #{shared_gin_forward.1} parent=1 // pred_check
      _
    $region19: #{shared_gin_forward.1} parent=1 // pred_check_branch
      %26 = sbr.rel (0) target = $region21
    $region20: #{shared_gin_forward.1} parent=1 // pred_region
      _
    $region21: #{shared_gin_forward.1} parent=1 // pred_fallthru
      _
    // Predicated region
    $region22: #{shared_gin_forward.1} parent=1 // pred_check
      _
    $region23: #{shared_gin_forward.1} parent=1 // pred_check_branch
      %28 = sbr.rel (0) target = $region25
    $region24: #{shared_gin_forward.1} parent=1 // pred_region
      _
    $region25: #{shared_gin_forward.1} parent=1 // pred_fallthru
      _
    // Predicated region
    $region26: #{shared_gin_forward.1} parent=1 // pred_check
      _
    $region27: #{shared_gin_forward.1} parent=1 // pred_check_branch
      %30 = sbr.rel (0) target = $region29
    $region28: #{shared_gin_forward.1} parent=1 // pred_region
      _
    $region29: #{shared_gin_forward.1} parent=1 // pred_fallthru
      _
    // Predicated region
    $region30: #{shared_gin_forward.1} parent=1 // pred_check
      _
    $region31: #{shared_gin_forward.1} parent=1 // pred_check_branch
      %32 = sbr.rel (0) target = $region33
    $region32: #{shared_gin_forward.1} parent=1 // pred_region
      _
    $region33: #{shared_gin_forward.1} parent=1 // pred_fallthru
      _
    %v34 = vld [vmem:[%s1] sm:$0xf]
    %v35 = vld [vmem:[%s1 + $0x4] sm:$0xf]
    %v36 = vld [vmem:[%s0] sm:$0xf]
    %v37 = vld [vmem:[%s0 + $0x4] sm:$0xf]
    %v38 = vld [vmem:[%s3] sm:$0xf]
    %v39 = vld [vmem:[%s5] sm:$0xf]
    %v40 = vld [vmem:[%s5 + $0x4] sm:$0xf]
    %v41 = vld [vmem:[%s5 + $0x8] sm:$0xf]
    %v42 = vld [vmem:[%s5 + $0xc] sm:$0xf]
    %v43 = vld [vmem:[%s6] sm:$0x1]
    %v44 = vld [vmem:[%s7] sm:$0x1]
    %v47 = vunpack.c.l.b16 %v34
    %v48 = vunpack.c.l.b16 %v35
    %v49 = vpack.c.b16 %v48, %v47
    %v52 = vunpack.c.l.b16 %v36
    %v53 = vunpack.c.l.b16 %v37
    %v54 = vpack.c.b16 %v53, %v52
    %vm56 = vcmask 130048
    %v58 = vsel %vm56, %v49, 0
    %60 = vmatprep.subr.bf16.mxu0 0
    %61 = vmatpush1.bf16.msra.mxu0 %v54
    %62 = vmatprep.subr.bf16.mxu0 0
    %63 = vmatpush1.bf16.msra.mxu0 0
    %64 = vmatprep.subr.bf16.mxu0 0
    %65 = vmatpush1.bf16.msra.mxu0 0
    %66 = vmatprep.subr.bf16.mxu0 0
    %67 = vmatpush1.bf16.msra.mxu0 0
    %68 = vmatprep.subr.bf16.mxu0 0
    %69 = vmatpush1.bf16.msra.mxu0 0
    %70 = vmatprep.subr.bf16.mxu0 0
    %71 = vmatpush1.bf16.msra.mxu0 0
    %72 = vmatprep.subr.bf16.mxu0 0
    %73 = vmatpush1.bf16.msra.mxu0 0
    %74 = vmatprep.subr.bf16.mxu0 0
    %75 = vmatpush1.bf16.msra.mxu0 0
    %76 = vmatprep.subr.bf16.mxu0 0
    %77 = vmatpush1.bf16.msra.mxu0 0
    %78 = vmatprep.subr.bf16.mxu0 0
    %79 = vmatpush1.bf16.msra.mxu0 0
    %80 = vmatprep.subr.bf16.mxu0 0
    %81 = vmatpush1.bf16.msra.mxu0 0
    %82 = vmatprep.subr.bf16.mxu0 0
    %83 = vmatpush1.bf16.msra.mxu0 0
    %84 = vmatprep.subr.bf16.mxu0 0
    %85 = vmatpush1.bf16.msra.mxu0 0
    %86 = vmatprep.subr.bf16.mxu0 0
    %87 = vmatpush1.bf16.msra.mxu0 0
    %88 = vmatprep.subr.bf16.mxu0 0
    %89 = vmatpush1.bf16.msra.mxu0 0
    %90 = vmatprep.subr.bf16.mxu0 0
    %91 = vmatpush1.bf16.msra.mxu0 0
    %92 = vmatprep.mubr.bf16.mxu0 0
    %93 = vmatmul.mubr.bf16.gmra.mrb[0].mxu0 %v58
    %v94 = vpop.f32.mrb[0].mxu0
    %v95 = vadd.f32 0.0, %v94
    %v96 = vpop.f32.mrb[0].mxu0
    %v97 = vpop.f32.mrb[0].mxu0
    %v98 = vadd.f32 0.0, %v97
    %v99 = vpop.f32.mrb[0].mxu0
    %100 = vdwg.mxu0
    %v101 = vpack.c.bf16 %v98, %v95
    %v102 = vlaneseq
    %v103 = vshrl.u32 %v102, 7
    %v104 = vsub.s32 0, %v103
    %v105 = vrot.slane %v43, %v104
    %vm106 = vcmask 64512
    %v108 = vsel %vm106, %v101, 0
    %vm110 = vcmask 1043456
    %v112 = vsel %vm110, %v38, 0
    %114 = vmatprep.subr.bf16.mxu0 0
    %115 = vmatpush1.bf16.msra.mxu0 %v112
    %116 = vmatprep.subr.bf16.mxu0 0
    %117 = vmatpush1.bf16.msra.mxu0 0
    %118 = vmatprep.subr.bf16.mxu0 0
    %119 = vmatpush1.bf16.msra.mxu0 0
    %120 = vmatprep.subr.bf16.mxu0 0
    %121 = vmatpush1.bf16.msra.mxu0 0
    %122 = vmatprep.subr.bf16.mxu0 0
    %123 = vmatpush1.bf16.msra.mxu0 0
    %124 = vmatprep.subr.bf16.mxu0 0
    %125 = vmatpush1.bf16.msra.mxu0 0
    %126 = vmatprep.subr.bf16.mxu0 0
    %127 = vmatpush1.bf16.msra.mxu0 0
    %128 = vmatprep.subr.bf16.mxu0 0
    %129 = vmatpush1.bf16.msra.mxu0 0
    %130 = vmatprep.subr.bf16.mxu0 0
    %131 = vmatpush1.bf16.msra.mxu0 0
    %132 = vmatprep.subr.bf16.mxu0 0
    %133 = vmatpush1.bf16.msra.mxu0 0
    %134 = vmatprep.subr.bf16.mxu0 0
    %135 = vmatpush1.bf16.msra.mxu0 0
    %136 = vmatprep.subr.bf16.mxu0 0
    %137 = vmatpush1.bf16.msra.mxu0 0
    %138 = vmatprep.subr.bf16.mxu0 0
    %139 = vmatpush1.bf16.msra.mxu0 0
    %140 = vmatprep.subr.bf16.mxu0 0
    %141 = vmatpush1.bf16.msra.mxu0 0
    %142 = vmatprep.subr.bf16.mxu0 0
    %143 = vmatpush1.bf16.msra.mxu0 0
    %144 = vmatprep.subr.bf16.mxu0 0
    %145 = vmatpush1.bf16.msra.mxu0 0
    %146 = vmatprep.mubr.bf16.mxu0 0
    %147 = vmatmul.mubr.bf16.gmra.mrb[0].mxu0 %v108
    %v148 = vpop.f32.mrb[0].mxu0
    %v149 = vadd.f32 %v105, %v148
    %v150 = vpop.f32.mrb[0].mxu0
    %v151 = vpop.f32.mrb[0].mxu0
    %v152 = vadd.f32 %v105, %v151
    %v153 = vpop.f32.mrb[0].mxu0
    %154 = vdwg.mxu0
    %vm155 = vcmp.ge.f32.partialorder %v149, 0.0
    %vm156 = vcmp.ge.f32.partialorder %v152, 0.0
    %v157 = vmul.f32 %v149, 0.01
    %v158 = vmul.f32 %v152, 0.01
    %v159 = vsel %vm155, %v149, %v157
    %v160 = vsel %vm156, %v152, %v158
    %v161 = vpack.c.bf16 %v160, %v159
    %v162 = vlaneseq
    %v163 = vshrl.u32 %v162, 7
    %v164 = vsub.s32 0, %v163
    %v165 = vrot.slane %v44, %v164
    %v170 = vunpack.c.l.b16 %v39
    %v171 = vunpack.c.l.b16 %v40
    %v172 = vunpack.c.l.b16 %v41
    %v173 = vunpack.c.l.b16 %v42
    %v174 = vpack.c.b16 %v171, %v170
    %v175 = vpack.c.b16 %v173, %v172
    %vm178 = vcmask 261120
    %v180 = vsel %vm178, %v161, 0
    %182 = vmatprep.subr.bf16.mxu0 0
    %183 = vmatpush1.bf16.msra.mxu0 %v174
    %184 = vmatprep.subr.bf16.mxu0 0
    %185 = vmatpush1.bf16.msra.mxu0 %v175
    %186 = vmatprep.subr.bf16.mxu0 0
    %187 = vmatpush1.bf16.msra.mxu0 0
    %188 = vmatprep.subr.bf16.mxu0 0
    %189 = vmatpush1.bf16.msra.mxu0 0
    %190 = vmatprep.subr.bf16.mxu0 0
    %191 = vmatpush1.bf16.msra.mxu0 0
    %192 = vmatprep.subr.bf16.mxu0 0
    %193 = vmatpush1.bf16.msra.mxu0 0
    %194 = vmatprep.subr.bf16.mxu0 0
    %195 = vmatpush1.bf16.msra.mxu0 0
    %196 = vmatprep.subr.bf16.mxu0 0
    %197 = vmatpush1.bf16.msra.mxu0 0
    %198 = vmatprep.subr.bf16.mxu0 0
    %199 = vmatpush1.bf16.msra.mxu0 0
    %200 = vmatprep.subr.bf16.mxu0 0
    %201 = vmatpush1.bf16.msra.mxu0 0
    %202 = vmatprep.subr.bf16.mxu0 0
    %203 = vmatpush1.bf16.msra.mxu0 0
    %204 = vmatprep.subr.bf16.mxu0 0
    %205 = vmatpush1.bf16.msra.mxu0 0
    %206 = vmatprep.subr.bf16.mxu0 0
    %207 = vmatpush1.bf16.msra.mxu0 0
    %208 = vmatprep.subr.bf16.mxu0 0
    %209 = vmatpush1.bf16.msra.mxu0 0
    %210 = vmatprep.subr.bf16.mxu0 0
    %211 = vmatpush1.bf16.msra.mxu0 0
    %212 = vmatprep.subr.bf16.mxu0 0
    %213 = vmatpush1.bf16.msra.mxu0 0
    %214 = vmatprep.mubr.bf16.mxu0 0
    %215 = vmatmul.mubr.bf16.gmra.mrb[0].mxu0 %v180
    %v216 = vpop.f32.mrb[0].mxu0
    %v217 = vadd.f32 %v165, %v216
    %v218 = vpop.f32.mrb[0].mxu0
    %v219 = vpop.f32.mrb[0].mxu0
    %v220 = vadd.f32 %v165, %v219
    %v221 = vpop.f32.mrb[0].mxu0
    %222 = vdwg.mxu0
    %v223 = vsel %vm178, %v217, 0.0
    %v224 = vsel %vm178, %v220, 0.0
    %v225 = vadd.f32 %v223, %v224
    %v226 = vrot.slane %v225, 4
    %v227 = vadd.f32 %v225, %v226
    %v228 = vrot.slane %v227, 2
    %v229 = vadd.f32 %v227, %v228
    %v230 = vrot.slane %v229, 1
    %v231 = vadd.f32 %v229, %v230
    %v232 = vmul.f32 %v231, 0.0625
    %v233 = vmul.f32 %v217, %v217
    %v234 = vmul.f32 %v220, %v220
    %v235 = vsel %vm178, %v233, 0.0
    %v236 = vsel %vm178, %v234, 0.0
    %v237 = vadd.f32 %v235, %v236
    %v238 = vrot.slane %v237, 4
    %v239 = vadd.f32 %v237, %v238
    %v240 = vrot.slane %v239, 2
    %v241 = vadd.f32 %v239, %v240
    %v242 = vrot.slane %v241, 1
    %v243 = vadd.f32 %v241, %v242
    %v244 = vmul.f32 %v243, 0.0625
    %v245 = vmul.f32 %v232, %v232
    %v246 = vsub.f32 %v244, %v245
    %v247 = vmax.f32 %v246, 0.0
    %v248 = vsub.f32 %v217, %v232
    %v249 = vsub.f32 %v220, %v232
    %v250 = vadd.f32 %v247, 0.0001
    %v251 = vrsqrt.pop %v250
    %v252 = vmul.f32 %v248, %v251
    %v253 = vmul.f32 %v249, %v251
    %254 = vst.msk [vmem:[#allocation2] sm:$0xff] %vm178, %v252
    %255 = vst.msk [vmem:[#allocation2 + $0x8] sm:$0xff] %vm178, %v253
    %v256 = vpack.c.bf16 %v253, %v252
    %v257 = vld [vmem:[%s4] sm:$0xf]
    %v258 = vld [vmem:[%s4 + $0x4] sm:$0xf]
    %v259 = vld [vmem:[%s4 + $0x8] sm:$0xf]
    %v260 = vld [vmem:[%s4 + $0xc] sm:$0xf]
    %s261 = scalar_lea.vmem %s5, 16
    %v262 = vld [vmem:[%s261] sm:$0xf]
    %v263 = vld [vmem:[%s261 + $0x4] sm:$0xf]
    %v264 = vld [vmem:[%s261 + $0x8] sm:$0xf]
    %v265 = vld [vmem:[%s261 + $0xc] sm:$0xf]
    %v266 = vld [vmem:[%s6 + $0x1] sm:$0x1]
    %v267 = vld [vmem:[%s7 + $0x1] sm:$0x1]
    %268 = vmatprep.subr.bf16.mxu0 0
    %269 = vmatpush1.bf16.msra.mxu0 %v256
    %270 = vmatprep.subr.bf16.mxu0 0
    %271 = vmatpush1.bf16.msra.mxu0 0
    %272 = vmatprep.subr.bf16.mxu0 0
    %273 = vmatpush1.bf16.msra.mxu0 0
    %274 = vmatprep.subr.bf16.mxu0 0
    %275 = vmatpush1.bf16.msra.mxu0 0
    %276 = vmatprep.subr.bf16.mxu0 0
    %277 = vmatpush1.bf16.msra.mxu0 0
    %278 = vmatprep.subr.bf16.mxu0 0
    %279 = vmatpush1.bf16.msra.mxu0 0
    %280 = vmatprep.subr.bf16.mxu0 0
    %281 = vmatpush1.bf16.msra.mxu0 0
    %282 = vmatprep.subr.bf16.mxu0 0
    %283 = vmatpush1.bf16.msra.mxu0 0
    %284 = vmatprep.subr.bf16.mxu0 0
    %285 = vmatpush1.bf16.msra.mxu0 0
    %286 = vmatprep.subr.bf16.mxu0 0
    %287 = vmatpush1.bf16.msra.mxu0 0
    %288 = vmatprep.subr.bf16.mxu0 0
    %289 = vmatpush1.bf16.msra.mxu0 0
    %290 = vmatprep.subr.bf16.mxu0 0
    %291 = vmatpush1.bf16.msra.mxu0 0
    %292 = vmatprep.subr.bf16.mxu0 0
    %293 = vmatpush1.bf16.msra.mxu0 0
    %294 = vmatprep.subr.bf16.mxu0 0
    %295 = vmatpush1.bf16.msra.mxu0 0
    %296 = vmatprep.subr.bf16.mxu0 0
    %297 = vmatpush1.bf16.msra.mxu0 0
    %298 = vmatprep.subr.bf16.mxu0 0
    %299 = vmatpush1.bf16.msra.mxu0 0
    %300 = vmatprep.mubr.bf16.mxu0 0
    %301 = vmatmul.mubr.bf16.gmra.mrb[0].mxu0 %v58
    %v302 = vpop.f32.mrb[0].mxu0
    %v303 = vadd.f32 0.0, %v302
    %v304 = vpop.f32.mrb[0].mxu0
    %v305 = vpop.f32.mrb[0].mxu0
    %v306 = vadd.f32 0.0, %v305
    %v307 = vpop.f32.mrb[0].mxu0
    %308 = vdwg.mxu0
    %v309 = vpack.c.bf16 %v306, %v303
    %v310 = vlaneseq
    %v311 = vshrl.u32 %v310, 7
    %v312 = vsub.s32 0, %v311
    %v313 = vrot.slane %v266, %v312
    %v318 = vunpack.c.l.b16 %v257
    %v319 = vunpack.c.l.b16 %v258
    %v320 = vunpack.c.l.b16 %v259
    %v321 = vunpack.c.l.b16 %v260
    %v322 = vpack.c.b16 %v319, %v318
    %v323 = vpack.c.b16 %v321, %v320
    %v327 = vsel %vm178, %v309, 0
    %329 = vmatprep.subr.bf16.mxu0 0
    %330 = vmatpush1.bf16.msra.mxu0 %v322
    %331 = vmatprep.subr.bf16.mxu0 0
    %332 = vmatpush1.bf16.msra.mxu0 %v323
    %333 = vmatprep.subr.bf16.mxu0 0
    %334 = vmatpush1.bf16.msra.mxu0 0
    %335 = vmatprep.subr.bf16.mxu0 0
    %336 = vmatpush1.bf16.msra.mxu0 0
    %337 = vmatprep.subr.bf16.mxu0 0
    %338 = vmatpush1.bf16.msra.mxu0 0
    %339 = vmatprep.subr.bf16.mxu0 0
    %340 = vmatpush1.bf16.msra.mxu0 0
    %341 = vmatprep.subr.bf16.mxu0 0
    %342 = vmatpush1.bf16.msra.mxu0 0
    %343 = vmatprep.subr.bf16.mxu0 0
    %344 = vmatpush1.bf16.msra.mxu0 0
    %345 = vmatprep.subr.bf16.mxu0 0
    %346 = vmatpush1.bf16.msra.mxu0 0
    %347 = vmatprep.subr.bf16.mxu0 0
    %348 = vmatpush1.bf16.msra.mxu0 0
    %349 = vmatprep.subr.bf16.mxu0 0
    %350 = vmatpush1.bf16.msra.mxu0 0
    %351 = vmatprep.subr.bf16.mxu0 0
    %352 = vmatpush1.bf16.msra.mxu0 0
    %353 = vmatprep.subr.bf16.mxu0 0
    %354 = vmatpush1.bf16.msra.mxu0 0
    %355 = vmatprep.subr.bf16.mxu0 0
    %356 = vmatpush1.bf16.msra.mxu0 0
    %357 = vmatprep.subr.bf16.mxu0 0
    %358 = vmatpush1.bf16.msra.mxu0 0
    %359 = vmatprep.subr.bf16.mxu0 0
    %360 = vmatpush1.bf16.msra.mxu0 0
    %361 = vmatprep.mubr.bf16.mxu0 0
    %362 = vmatmul.mubr.bf16.gmra.mrb[0].mxu0 %v327
    %v363 = vpop.f32.mrb[0].mxu0
    %v364 = vadd.f32 %v313, %v363
    %v365 = vpop.f32.mrb[0].mxu0
    %v366 = vpop.f32.mrb[0].mxu0
    %v367 = vadd.f32 %v313, %v366
    %v368 = vpop.f32.mrb[0].mxu0
    %369 = vdwg.mxu0
    %vm370 = vcmp.ge.f32.partialorder %v364, 0.0
    %vm371 = vcmp.ge.f32.partialorder %v367, 0.0
    %v372 = vmul.f32 %v364, 0.01
    %v373 = vmul.f32 %v367, 0.01
    %v374 = vsel %vm370, %v364, %v372
    %v375 = vsel %vm371, %v367, %v373
    %v376 = vpack.c.bf16 %v375, %v374
    %v377 = vlaneseq
    %v378 = vshrl.u32 %v377, 7
    %v379 = vsub.s32 0, %v378
    %v380 = vrot.slane %v267, %v379
    %v385 = vunpack.c.l.b16 %v262
    %v386 = vunpack.c.l.b16 %v263
    %v387 = vunpack.c.l.b16 %v264
    %v388 = vunpack.c.l.b16 %v265
    %v389 = vpack.c.b16 %v386, %v385
    %v390 = vpack.c.b16 %v388, %v387
    %v394 = vsel %vm178, %v376, 0
    %396 = vmatprep.subr.bf16.mxu0 0
    %397 = vmatpush1.bf16.msra.mxu0 %v389
    %398 = vmatprep.subr.bf16.mxu0 0
    %399 = vmatpush1.bf16.msra.mxu0 %v390
    %400 = vmatprep.subr.bf16.mxu0 0
    %401 = vmatpush1.bf16.msra.mxu0 0
    %402 = vmatprep.subr.bf16.mxu0 0
    %403 = vmatpush1.bf16.msra.mxu0 0
    %404 = vmatprep.subr.bf16.mxu0 0
    %405 = vmatpush1.bf16.msra.mxu0 0
    %406 = vmatprep.subr.bf16.mxu0 0
    %407 = vmatpush1.bf16.msra.mxu0 0
    %408 = vmatprep.subr.bf16.mxu0 0
    %409 = vmatpush1.bf16.msra.mxu0 0
    %410 = vmatprep.subr.bf16.mxu0 0
    %411 = vmatpush1.bf16.msra.mxu0 0
    %412 = vmatprep.subr.bf16.mxu0 0
    %413 = vmatpush1.bf16.msra.mxu0 0
    %414 = vmatprep.subr.bf16.mxu0 0
    %415 = vmatpush1.bf16.msra.mxu0 0
    %416 = vmatprep.subr.bf16.mxu0 0
    %417 = vmatpush1.bf16.msra.mxu0 0
    %418 = vmatprep.subr.bf16.mxu0 0
    %419 = vmatpush1.bf16.msra.mxu0 0
    %420 = vmatprep.subr.bf16.mxu0 0
    %421 = vmatpush1.bf16.msra.mxu0 0
    %422 = vmatprep.subr.bf16.mxu0 0
    %423 = vmatpush1.bf16.msra.mxu0 0
    %424 = vmatprep.subr.bf16.mxu0 0
    %425 = vmatpush1.bf16.msra.mxu0 0
    %426 = vmatprep.subr.bf16.mxu0 0
    %427 = vmatpush1.bf16.msra.mxu0 0
    %428 = vmatprep.mubr.bf16.mxu0 0
    %429 = vmatmul.mubr.bf16.gmra.mrb[0].mxu0 %v394
    %v430 = vpop.f32.mrb[0].mxu0
    %v431 = vadd.f32 %v380, %v430
    %v432 = vpop.f32.mrb[0].mxu0
    %v433 = vpop.f32.mrb[0].mxu0
    %v434 = vadd.f32 %v380, %v433
    %v435 = vpop.f32.mrb[0].mxu0
    %436 = vdwg.mxu0
    %v437 = vsel %vm178, %v431, 0.0
    %v438 = vsel %vm178, %v434, 0.0
    %v439 = vadd.f32 %v437, %v438
    %v440 = vrot.slane %v439, 4
    %v441 = vadd.f32 %v439, %v440
    %v442 = vrot.slane %v441, 2
    %v443 = vadd.f32 %v441, %v442
    %v444 = vrot.slane %v443, 1
    %v445 = vadd.f32 %v443, %v444
    %v446 = vmul.f32 %v445, 0.0625
    %v447 = vmul.f32 %v431, %v431
    %v448 = vmul.f32 %v434, %v434
    %v449 = vsel %vm178, %v447, 0.0
    %v450 = vsel %vm178, %v448, 0.0
    %v451 = vadd.f32 %v449, %v450
    %v452 = vrot.slane %v451, 4
    %v453 = vadd.f32 %v451, %v452
    %v454 = vrot.slane %v453, 2
    %v455 = vadd.f32 %v453, %v454
    %v456 = vrot.slane %v455, 1
    %v457 = vadd.f32 %v455, %v456
    %v458 = vmul.f32 %v457, 0.0625
    %v459 = vmul.f32 %v446, %v446
    %v460 = vsub.f32 %v458, %v459
    %v461 = vmax.f32 %v460, 0.0
    %v462 = vsub.f32 %v431, %v446
    %v463 = vsub.f32 %v434, %v446
    %v464 = vadd.f32 %v461, 0.0001
    %v465 = vrsqrt.pop %v464
    %v466 = vmul.f32 %v462, %v465
    %v467 = vmul.f32 %v463, %v465
    %470 = vrot.lane.b32.xlu0 %v466, 32
    %v471 = vpop.permute.xlu0 %470
    %472 = vrot.lane.b32.xlu0 %v467, 32
    %v473 = vpop.permute.xlu0 %472
    %vm476 = vcmask 523520
    %477 = vst.msk [vmem:[#allocation2] sm:$0xff] %vm476, %v471
    %478 = vst.msk [vmem:[#allocation2 + $0x8] sm:$0xff] %vm476, %v473
    %v479 = vpack.c.bf16 %v467, %v466
    %s480 = scalar_lea.vmem %s4, 16
    %v481 = vld [vmem:[%s480] sm:$0xf]
    %v482 = vld [vmem:[%s480 + $0x4] sm:$0xf]
    %v483 = vld [vmem:[%s480 + $0x8] sm:$0xf]
    %v484 = vld [vmem:[%s480 + $0xc] sm:$0xf]
    %s485 = scalar_lea.vmem %s5, 32
    %v486 = vld [vmem:[%s485] sm:$0xf]
    %v487 = vld [vmem:[%s485 + $0x4] sm:$0xf]
    %v488 = vld [vmem:[%s485 + $0x8] sm:$0xf]
    %v489 = vld [vmem:[%s485 + $0xc] sm:$0xf]
    %v490 = vld [vmem:[%s6 + $0x2] sm:$0x1]
    %v491 = vld [vmem:[%s7 + $0x2] sm:$0x1]
    %492 = vmatprep.subr.bf16.mxu0 0
    %493 = vmatpush1.bf16.msra.mxu0 %v479
    %494 = vmatprep.subr.bf16.mxu0 0
    %495 = vmatpush1.bf16.msra.mxu0 0
    %496 = vmatprep.subr.bf16.mxu0 0
    %497 = vmatpush1.bf16.msra.mxu0 0
    %498 = vmatprep.subr.bf16.mxu0 0
    %499 = vmatpush1.bf16.msra.mxu0 0
    %500 = vmatprep.subr.bf16.mxu0 0
    %501 = vmatpush1.bf16.msra.mxu0 0
    %502 = vmatprep.subr.bf16.mxu0 0
    %503 = vmatpush1.bf16.msra.mxu0 0
    %504 = vmatprep.subr.bf16.mxu0 0
    %505 = vmatpush1.bf16.msra.mxu0 0
    %506 = vmatprep.subr.bf16.mxu0 0
    %507 = vmatpush1.bf16.msra.mxu0 0
    %508 = vmatprep.subr.bf16.mxu0 0
    %509 = vmatpush1.bf16.msra.mxu0 0
    %510 = vmatprep.subr.bf16.mxu0 0
    %511 = vmatpush1.bf16.msra.mxu0 0
    %512 = vmatprep.subr.bf16.mxu0 0
    %513 = vmatpush1.bf16.msra.mxu0 0
    %514 = vmatprep.subr.bf16.mxu0 0
    %515 = vmatpush1.bf16.msra.mxu0 0
    %516 = vmatprep.subr.bf16.mxu0 0
    %517 = vmatpush1.bf16.msra.mxu0 0
    %518 = vmatprep.subr.bf16.mxu0 0
    %519 = vmatpush1.bf16.msra.mxu0 0
    %520 = vmatprep.subr.bf16.mxu0 0
    %521 = vmatpush1.bf16.msra.mxu0 0
    %522 = vmatprep.subr.bf16.mxu0 0
    %523 = vmatpush1.bf16.msra.mxu0 0
    %524 = vmatprep.mubr.bf16.mxu0 0
    %525 = vmatmul.mubr.bf16.gmra.mrb[0].mxu0 %v58
    %v526 = vpop.f32.mrb[0].mxu0
    %v527 = vadd.f32 0.0, %v526
    %v528 = vpop.f32.mrb[0].mxu0
    %v529 = vpop.f32.mrb[0].mxu0
    %v530 = vadd.f32 0.0, %v529
    %v531 = vpop.f32.mrb[0].mxu0
    %532 = vdwg.mxu0
    %v533 = vpack.c.bf16 %v530, %v527
    %v534 = vlaneseq
    %v535 = vshrl.u32 %v534, 7
    %v536 = vsub.s32 0, %v535
    %v537 = vrot.slane %v490, %v536
    %v542 = vunpack.c.l.b16 %v481
    %v543 = vunpack.c.l.b16 %v482
    %v544 = vunpack.c.l.b16 %v483
    %v545 = vunpack.c.l.b16 %v484
    %v546 = vpack.c.b16 %v543, %v542
    %v547 = vpack.c.b16 %v545, %v544
    %v551 = vsel %vm178, %v533, 0
    %553 = vmatprep.subr.bf16.mxu0 0
    %554 = vmatpush1.bf16.msra.mxu0 %v546
    %555 = vmatprep.subr.bf16.mxu0 0
    %556 = vmatpush1.bf16.msra.mxu0 %v547
    %557 = vmatprep.subr.bf16.mxu0 0
    %558 = vmatpush1.bf16.msra.mxu0 0
    %559 = vmatprep.subr.bf16.mxu0 0
    %560 = vmatpush1.bf16.msra.mxu0 0
    %561 = vmatprep.subr.bf16.mxu0 0
    %562 = vmatpush1.bf16.msra.mxu0 0
    %563 = vmatprep.subr.bf16.mxu0 0
    %564 = vmatpush1.bf16.msra.mxu0 0
    %565 = vmatprep.subr.bf16.mxu0 0
    %566 = vmatpush1.bf16.msra.mxu0 0
    %567 = vmatprep.subr.bf16.mxu0 0
    %568 = vmatpush1.bf16.msra.mxu0 0
    %569 = vmatprep.subr.bf16.mxu0 0
    %570 = vmatpush1.bf16.msra.mxu0 0
    %571 = vmatprep.subr.bf16.mxu0 0
    %572 = vmatpush1.bf16.msra.mxu0 0
    %573 = vmatprep.subr.bf16.mxu0 0
    %574 = vmatpush1.bf16.msra.mxu0 0
    %575 = vmatprep.subr.bf16.mxu0 0
    %576 = vmatpush1.bf16.msra.mxu0 0
    %577 = vmatprep.subr.bf16.mxu0 0
    %578 = vmatpush1.bf16.msra.mxu0 0
    %579 = vmatprep.subr.bf16.mxu0 0
    %580 = vmatpush1.bf16.msra.mxu0 0
    %581 = vmatprep.subr.bf16.mxu0 0
    %582 = vmatpush1.bf16.msra.mxu0 0
    %583 = vmatprep.subr.bf16.mxu0 0
    %584 = vmatpush1.bf16.msra.mxu0 0
    %585 = vmatprep.mubr.bf16.mxu0 0
    %586 = vmatmul.mubr.bf16.gmra.mrb[0].mxu0 %v551
    %v587 = vpop.f32.mrb[0].mxu0
    %v588 = vadd.f32 %v537, %v587
    %v589 = vpop.f32.mrb[0].mxu0
    %v590 = vpop.f32.mrb[0].mxu0
    %v591 = vadd.f32 %v537, %v590
    %v592 = vpop.f32.mrb[0].mxu0
    %593 = vdwg.mxu0
    %vm594 = vcmp.ge.f32.partialorder %v588, 0.0
    %vm595 = vcmp.ge.f32.partialorder %v591, 0.0
    %v596 = vmul.f32 %v588, 0.01
    %v597 = vmul.f32 %v591, 0.01
    %v598 = vsel %vm594, %v588, %v596
    %v599 = vsel %vm595, %v591, %v597
    %v600 = vpack.c.bf16 %v599, %v598
    %v601 = vlaneseq
    %v602 = vshrl.u32 %v601, 7
    %v603 = vsub.s32 0, %v602
    %v604 = vrot.slane %v491, %v603
    %v609 = vunpack.c.l.b16 %v486
    %v610 = vunpack.c.l.b16 %v487
    %v611 = vunpack.c.l.b16 %v488
    %v612 = vunpack.c.l.b16 %v489
    %v613 = vpack.c.b16 %v610, %v609
    %v614 = vpack.c.b16 %v612, %v611
    %v618 = vsel %vm178, %v600, 0
    %620 = vmatprep.subr.bf16.mxu0 0
    %621 = vmatpush1.bf16.msra.mxu0 %v613
    %622 = vmatprep.subr.bf16.mxu0 0
    %623 = vmatpush1.bf16.msra.mxu0 %v614
    %624 = vmatprep.subr.bf16.mxu0 0
    %625 = vmatpush1.bf16.msra.mxu0 0
    %626 = vmatprep.subr.bf16.mxu0 0
    %627 = vmatpush1.bf16.msra.mxu0 0
    %628 = vmatprep.subr.bf16.mxu0 0
    %629 = vmatpush1.bf16.msra.mxu0 0
    %630 = vmatprep.subr.bf16.mxu0 0
    %631 = vmatpush1.bf16.msra.mxu0 0
    %632 = vmatprep.subr.bf16.mxu0 0
    %633 = vmatpush1.bf16.msra.mxu0 0
    %634 = vmatprep.subr.bf16.mxu0 0
    %635 = vmatpush1.bf16.msra.mxu0 0
    %636 = vmatprep.subr.bf16.mxu0 0
    %637 = vmatpush1.bf16.msra.mxu0 0
    %638 = vmatprep.subr.bf16.mxu0 0
    %639 = vmatpush1.bf16.msra.mxu0 0
    %640 = vmatprep.subr.bf16.mxu0 0
    %641 = vmatpush1.bf16.msra.mxu0 0
    %642 = vmatprep.subr.bf16.mxu0 0
    %643 = vmatpush1.bf16.msra.mxu0 0
    %644 = vmatprep.subr.bf16.mxu0 0
    %645 = vmatpush1.bf16.msra.mxu0 0
    %646 = vmatprep.subr.bf16.mxu0 0
    %647 = vmatpush1.bf16.msra.mxu0 0
    %648 = vmatprep.subr.bf16.mxu0 0
    %649 = vmatpush1.bf16.msra.mxu0 0
    %650 = vmatprep.subr.bf16.mxu0 0
    %651 = vmatpush1.bf16.msra.mxu0 0
    %652 = vmatprep.mubr.bf16.mxu0 0
    %653 = vmatmul.mubr.bf16.gmra.mrb[0].mxu0 %v618
    %v654 = vpop.f32.mrb[0].mxu0
    %v655 = vadd.f32 %v604, %v654
    %v656 = vpop.f32.mrb[0].mxu0
    %v657 = vpop.f32.mrb[0].mxu0
    %v658 = vadd.f32 %v604, %v657
    %v659 = vpop.f32.mrb[0].mxu0
    %660 = vdwg.mxu0
    %v661 = vsel %vm178, %v655, 0.0
    %v662 = vsel %vm178, %v658, 0.0
    %v663 = vadd.f32 %v661, %v662
    %v664 = vrot.slane %v663, 4
    %v665 = vadd.f32 %v663, %v664
    %v666 = vrot.slane %v665, 2
    %v667 = vadd.f32 %v665, %v666
    %v668 = vrot.slane %v667, 1
    %v669 = vadd.f32 %v667, %v668
    %v670 = vmul.f32 %v669, 0.0625
    %v671 = vmul.f32 %v655, %v655
    %v672 = vmul.f32 %v658, %v658
    %v673 = vsel %vm178, %v671, 0.0
    %v674 = vsel %vm178, %v672, 0.0
    %v675 = vadd.f32 %v673, %v674
    %v676 = vrot.slane %v675, 4
    %v677 = vadd.f32 %v675, %v676
    %v678 = vrot.slane %v677, 2
    %v679 = vadd.f32 %v677, %v678
    %v680 = vrot.slane %v679, 1
    %v681 = vadd.f32 %v679, %v680
    %v682 = vmul.f32 %v681, 0.0625
    %v683 = vmul.f32 %v670, %v670
    %v684 = vsub.f32 %v682, %v683
    %v685 = vmax.f32 %v684, 0.0
    %v686 = vsub.f32 %v655, %v670
    %v687 = vsub.f32 %v658, %v670
    %v688 = vadd.f32 %v685, 0.0001
    %v689 = vrsqrt.pop %v688
    %v690 = vmul.f32 %v686, %v689
    %v691 = vmul.f32 %v687, %v689
    %694 = vrot.lane.b32.xlu0 %v690, 64
    %v695 = vpop.permute.xlu0 %694
    %696 = vrot.lane.b32.xlu0 %v691, 64
    %v697 = vpop.permute.xlu0 %696
    %vm700 = vcmask 785920
    %701 = vst.msk [vmem:[#allocation2] sm:$0xff] %vm700, %v695
    %702 = vst.msk [vmem:[#allocation2 + $0x8] sm:$0xff] %vm700, %v697
    %v703 = vpack.c.bf16 %v691, %v690
    %s704 = scalar_lea.vmem %s4, 32
    %v705 = vld [vmem:[%s704] sm:$0xf]
    %v706 = vld [vmem:[%s704 + $0x4] sm:$0xf]
    %v707 = vld [vmem:[%s704 + $0x8] sm:$0xf]
    %v708 = vld [vmem:[%s704 + $0xc] sm:$0xf]
    %s709 = scalar_lea.vmem %s5, 48
    %v710 = vld [vmem:[%s709] sm:$0xf]
    %v711 = vld [vmem:[%s709 + $0x4] sm:$0xf]
    %v712 = vld [vmem:[%s709 + $0x8] sm:$0xf]
    %v713 = vld [vmem:[%s709 + $0xc] sm:$0xf]
    %v714 = vld [vmem:[%s6 + $0x3] sm:$0x1]
    %v715 = vld [vmem:[%s7 + $0x3] sm:$0x1]
    %716 = vmatprep.subr.bf16.mxu0 0
    %717 = vmatpush1.bf16.msra.mxu0 %v703
    %718 = vmatprep.subr.bf16.mxu0 0
    %719 = vmatpush1.bf16.msra.mxu0 0
    %720 = vmatprep.subr.bf16.mxu0 0
    %721 = vmatpush1.bf16.msra.mxu0 0
    %722 = vmatprep.subr.bf16.mxu0 0
    %723 = vmatpush1.bf16.msra.mxu0 0
    %724 = vmatprep.subr.bf16.mxu0 0
    %725 = vmatpush1.bf16.msra.mxu0 0
    %726 = vmatprep.subr.bf16.mxu0 0
    %727 = vmatpush1.bf16.msra.mxu0 0
    %728 = vmatprep.subr.bf16.mxu0 0
    %729 = vmatpush1.bf16.msra.mxu0 0
    %730 = vmatprep.subr.bf16.mxu0 0
    %731 = vmatpush1.bf16.msra.mxu0 0
    %732 = vmatprep.subr.bf16.mxu0 0
    %733 = vmatpush1.bf16.msra.mxu0 0
    %734 = vmatprep.subr.bf16.mxu0 0
    %735 = vmatpush1.bf16.msra.mxu0 0
    %736 = vmatprep.subr.bf16.mxu0 0
    %737 = vmatpush1.bf16.msra.mxu0 0
    %738 = vmatprep.subr.bf16.mxu0 0
    %739 = vmatpush1.bf16.msra.mxu0 0
    %740 = vmatprep.subr.bf16.mxu0 0
    %741 = vmatpush1.bf16.msra.mxu0 0
    %742 = vmatprep.subr.bf16.mxu0 0
    %743 = vmatpush1.bf16.msra.mxu0 0
    %744 = vmatprep.subr.bf16.mxu0 0
    %745 = vmatpush1.bf16.msra.mxu0 0
    %746 = vmatprep.subr.bf16.mxu0 0
    %747 = vmatpush1.bf16.msra.mxu0 0
    %748 = vmatprep.mubr.bf16.mxu0 0
    %749 = vmatmul.mubr.bf16.gmra.mrb[0].mxu0 %v58
    %v750 = vpop.f32.mrb[0].mxu0
    %v751 = vadd.f32 0.0, %v750
    %v752 = vpop.f32.mrb[0].mxu0
    %v753 = vpop.f32.mrb[0].mxu0
    %v754 = vadd.f32 0.0, %v753
    %v755 = vpop.f32.mrb[0].mxu0
    %756 = vdwg.mxu0
    %v757 = vpack.c.bf16 %v754, %v751
    %v758 = vlaneseq
    %v759 = vshrl.u32 %v758, 7
    %v760 = vsub.s32 0, %v759
    %v761 = vrot.slane %v714, %v760
    %v766 = vunpack.c.l.b16 %v705
    %v767 = vunpack.c.l.b16 %v706
    %v768 = vunpack.c.l.b16 %v707
    %v769 = vunpack.c.l.b16 %v708
    %v770 = vpack.c.b16 %v767, %v766
    %v771 = vpack.c.b16 %v769, %v768
    %v775 = vsel %vm178, %v757, 0
    %777 = vmatprep.subr.bf16.mxu0 0
    %778 = vmatpush1.bf16.msra.mxu0 %v770
    %779 = vmatprep.subr.bf16.mxu0 0
    %780 = vmatpush1.bf16.msra.mxu0 %v771
    %781 = vmatprep.subr.bf16.mxu0 0
    %782 = vmatpush1.bf16.msra.mxu0 0
    %783 = vmatprep.subr.bf16.mxu0 0
    %784 = vmatpush1.bf16.msra.mxu0 0
    %785 = vmatprep.subr.bf16.mxu0 0
    %786 = vmatpush1.bf16.msra.mxu0 0
    %787 = vmatprep.subr.bf16.mxu0 0
    %788 = vmatpush1.bf16.msra.mxu0 0
    %789 = vmatprep.subr.bf16.mxu0 0
    %790 = vmatpush1.bf16.msra.mxu0 0
    %791 = vmatprep.subr.bf16.mxu0 0
    %792 = vmatpush1.bf16.msra.mxu0 0
    %793 = vmatprep.subr.bf16.mxu0 0
    %794 = vmatpush1.bf16.msra.mxu0 0
    %795 = vmatprep.subr.bf16.mxu0 0
    %796 = vmatpush1.bf16.msra.mxu0 0
    %797 = vmatprep.subr.bf16.mxu0 0
    %798 = vmatpush1.bf16.msra.mxu0 0
    %799 = vmatprep.subr.bf16.mxu0 0
    %800 = vmatpush1.bf16.msra.mxu0 0
    %801 = vmatprep.subr.bf16.mxu0 0
    %802 = vmatpush1.bf16.msra.mxu0 0
    %803 = vmatprep.subr.bf16.mxu0 0
    %804 = vmatpush1.bf16.msra.mxu0 0
    %805 = vmatprep.subr.bf16.mxu0 0
    %806 = vmatpush1.bf16.msra.mxu0 0
    %807 = vmatprep.subr.bf16.mxu0 0
    %808 = vmatpush1.bf16.msra.mxu0 0
    %809 = vmatprep.mubr.bf16.mxu0 0
    %810 = vmatmul.mubr.bf16.gmra.mrb[0].mxu0 %v775
    %v811 = vpop.f32.mrb[0].mxu0
    %v812 = vadd.f32 %v761, %v811
    %v813 = vpop.f32.mrb[0].mxu0
    %v814 = vpop.f32.mrb[0].mxu0
    %v815 = vadd.f32 %v761, %v814
    %v816 = vpop.f32.mrb[0].mxu0
    %817 = vdwg.mxu0
    %vm818 = vcmp.ge.f32.partialorder %v812, 0.0
    %vm819 = vcmp.ge.f32.partialorder %v815, 0.0
    %v820 = vmul.f32 %v812, 0.01
    %v821 = vmul.f32 %v815, 0.01
    %v822 = vsel %vm818, %v812, %v820
    %v823 = vsel %vm819, %v815, %v821
    %v824 = vpack.c.bf16 %v823, %v822
    %v825 = vlaneseq
    %v826 = vshrl.u32 %v825, 7
    %v827 = vsub.s32 0, %v826
    %v828 = vrot.slane %v715, %v827
    %v833 = vunpack.c.l.b16 %v710
    %v834 = vunpack.c.l.b16 %v711
    %v835 = vunpack.c.l.b16 %v712
    %v836 = vunpack.c.l.b16 %v713
    %v837 = vpack.c.b16 %v834, %v833
    %v838 = vpack.c.b16 %v836, %v835
    %v842 = vsel %vm178, %v824, 0
    %844 = vmatprep.subr.bf16.mxu0 0
    %845 = vmatpush1.bf16.msra.mxu0 %v837
    %846 = vmatprep.subr.bf16.mxu0 0
    %847 = vmatpush1.bf16.msra.mxu0 %v838
    %848 = vmatprep.subr.bf16.mxu0 0
    %849 = vmatpush1.bf16.msra.mxu0 0
    %850 = vmatprep.subr.bf16.mxu0 0
    %851 = vmatpush1.bf16.msra.mxu0 0
    %852 = vmatprep.subr.bf16.mxu0 0
    %853 = vmatpush1.bf16.msra.mxu0 0
    %854 = vmatprep.subr.bf16.mxu0 0
    %855 = vmatpush1.bf16.msra.mxu0 0
    %856 = vmatprep.subr.bf16.mxu0 0
    %857 = vmatpush1.bf16.msra.mxu0 0
    %858 = vmatprep.subr.bf16.mxu0 0
    %859 = vmatpush1.bf16.msra.mxu0 0
    %860 = vmatprep.subr.bf16.mxu0 0
    %861 = vmatpush1.bf16.msra.mxu0 0
    %862 = vmatprep.subr.bf16.mxu0 0
    %863 = vmatpush1.bf16.msra.mxu0 0
    %864 = vmatprep.subr.bf16.mxu0 0
    %865 = vmatpush1.bf16.msra.mxu0 0
    %866 = vmatprep.subr.bf16.mxu0 0
    %867 = vmatpush1.bf16.msra.mxu0 0
    %868 = vmatprep.subr.bf16.mxu0 0
    %869 = vmatpush1.bf16.msra.mxu0 0
    %870 = vmatprep.subr.bf16.mxu0 0
    %871 = vmatpush1.bf16.msra.mxu0 0
    %872 = vmatprep.subr.bf16.mxu0 0
    %873 = vmatpush1.bf16.msra.mxu0 0
    %874 = vmatprep.subr.bf16.mxu0 0
    %875 = vmatpush1.bf16.msra.mxu0 0
    %876 = vmatprep.mubr.bf16.mxu0 0
    %877 = vmatmul.mubr.bf16.gmra.mrb[0].mxu0 %v842
    %v878 = vpop.f32.mrb[0].mxu0
    %v879 = vadd.f32 %v828, %v878
    %v880 = vpop.f32.mrb[0].mxu0
    %v881 = vpop.f32.mrb[0].mxu0
    %v882 = vadd.f32 %v828, %v881
    %v883 = vpop.f32.mrb[0].mxu0
    %884 = vdwg.mxu0
    %v885 = vsel %vm178, %v879, 0.0
    %v886 = vsel %vm178, %v882, 0.0
    %v887 = vadd.f32 %v885, %v886
    %v888 = vrot.slane %v887, 4
    %v889 = vadd.f32 %v887, %v888
    %v890 = vrot.slane %v889, 2
    %v891 = vadd.f32 %v889, %v890
    %v892 = vrot.slane %v891, 1
    %v893 = vadd.f32 %v891, %v892
    %v894 = vmul.f32 %v893, 0.0625
    %v895 = vmul.f32 %v879, %v879
    %v896 = vmul.f32 %v882, %v882
    %v897 = vsel %vm178, %v895, 0.0
    %v898 = vsel %vm178, %v896, 0.0
    %v899 = vadd.f32 %v897, %v898
    %v900 = vrot.slane %v899, 4
    %v901 = vadd.f32 %v899, %v900
    %v902 = vrot.slane %v901, 2
    %v903 = vadd.f32 %v901, %v902
    %v904 = vrot.slane %v903, 1
    %v905 = vadd.f32 %v903, %v904
    %v906 = vmul.f32 %v905, 0.0625
    %v907 = vmul.f32 %v894, %v894
    %v908 = vsub.f32 %v906, %v907
    %v909 = vmax.f32 %v908, 0.0
    %v910 = vsub.f32 %v879, %v894
    %v911 = vsub.f32 %v882, %v894
    %v912 = vadd.f32 %v909, 0.0001
    %v913 = vrsqrt.pop %v912
    %v914 = vmul.f32 %v910, %v913
    %v915 = vmul.f32 %v911, %v913
    %918 = vrot.lane.b32.xlu0 %v914, 96
    %v919 = vpop.permute.xlu0 %918
    %920 = vrot.lane.b32.xlu0 %v915, 96
    %v921 = vpop.permute.xlu0 %920
    %vm924 = vcmask 1048320
    %925 = vst.msk [vmem:[#allocation2] sm:$0xff] %vm924, %v919
    %926 = vst.msk [vmem:[#allocation2 + $0x8] sm:$0xff] %vm924, %v921
    %v927 = vld [vmem:[#allocation2] sm:$0xff]
    %v928 = vld [vmem:[#allocation2 + $0x8] sm:$0xff]
    %929 = vst [vmem:[#allocation3] sm:$0xff] %v927
    %930 = vst [vmem:[#allocation3 + $0x8] sm:$0xff] %v928
    %v931 = vld [vmem:[%s2] sm:$0x1]
    %v932 = vpack.c.bf16 %v928, %v927
    %v934 = vsel %vm56, %v931, 0
    %936 = vmatprep.subr.bf16.mxu0 0
    %937 = vmatpush1.bf16.msra.mxu0 %v932
    %938 = vmatprep.subr.bf16.mxu0 0
    %939 = vmatpush1.bf16.msra.mxu0 0
    %940 = vmatprep.subr.bf16.mxu0 0
    %941 = vmatpush1.bf16.msra.mxu0 0
    %942 = vmatprep.subr.bf16.mxu0 0
    %943 = vmatpush1.bf16.msra.mxu0 0
    %944 = vmatprep.subr.bf16.mxu0 0
    %945 = vmatpush1.bf16.msra.mxu0 0
    %946 = vmatprep.subr.bf16.mxu0 0
    %947 = vmatpush1.bf16.msra.mxu0 0
    %948 = vmatprep.subr.bf16.mxu0 0
    %949 = vmatpush1.bf16.msra.mxu0 0
    %950 = vmatprep.subr.bf16.mxu0 0
    %951 = vmatpush1.bf16.msra.mxu0 0
    %952 = vmatprep.subr.bf16.mxu0 0
    %953 = vmatpush1.bf16.msra.mxu0 0
    %954 = vmatprep.subr.bf16.mxu0 0
    %955 = vmatpush1.bf16.msra.mxu0 0
    %956 = vmatprep.subr.bf16.mxu0 0
    %957 = vmatpush1.bf16.msra.mxu0 0
    %958 = vmatprep.subr.bf16.mxu0 0
    %959 = vmatpush1.bf16.msra.mxu0 0
    %960 = vmatprep.subr.bf16.mxu0 0
    %961 = vmatpush1.bf16.msra.mxu0 0
    %962 = vmatprep.subr.bf16.mxu0 0
    %963 = vmatpush1.bf16.msra.mxu0 0
    %964 = vmatprep.subr.bf16.mxu0 0
    %965 = vmatpush1.bf16.msra.mxu0 0
    %966 = vmatprep.subr.bf16.mxu0 0
    %967 = vmatpush1.bf16.msra.mxu0 0
    %968 = vmatprep.mubr.bf16.mxu0 0
    %969 = vmatmul.mubr.bf16.gmra.mrb[0].mxu0 %v934
    %v970 = vpop.f32.mrb[0].mxu0
    %v971 = vadd.f32 0.0, %v970
    %v972 = vpop.f32.mrb[0].mxu0
    %v973 = vpop.f32.mrb[0].mxu0
    %v974 = vpop.f32.mrb[0].mxu0
    %975 = vdwg.mxu0
    %976 = vst [vmem:[#allocation5] sm:$0x3] %v971
    // Predicated region
    $region34: #{shared_gin_forward.1} parent=1 // pred_check
      _
    $region35: #{shared_gin_forward.1} parent=1 // pred_check_branch
      %978 = sbr.rel (0) target = $region37
    $region36: #{shared_gin_forward.1} parent=1 // pred_region
      %s980 = ssub.s32 256, 256
      %981 = vsyncadd [#allocation4], %s980
      %s982 = sshll.u32 [#allocation3], 4
      %s983 = int_to_ptr.vmem [resolvable:$true] %s982
      %988 = dma.vmem_to_hbm [thread:$0]  %s983, 256, %s8, [#allocation4], 128, 128, 8
    $region37: #{shared_gin_forward.1} parent=1 // pred_fallthru
      _
    // Predicated region
    $region38: #{shared_gin_forward.1} parent=1 // pred_check
      _
    $region39: #{shared_gin_forward.1} parent=1 // pred_check_branch
      %990 = sbr.rel (0) target = $region41
    $region40: #{shared_gin_forward.1} parent=1 // pred_region
      %s992 = ssub.s32 32, 32
      %993 = vsyncadd [#allocation6], %s992
      %s995 = sshll.u32 [#allocation5], 4
      %s996 = int_to_ptr.vmem [resolvable:$true] %s995
      %998 = dma.vmem_to_hbm [thread:$0]  %s996, 32, %s9, [#allocation6]
    $region41: #{shared_gin_forward.1} parent=1 // pred_fallthru
      _
    // Predicated region
    $region42: #{shared_gin_forward.1} parent=1 // pred_check
      _
    $region43: #{shared_gin_forward.1} parent=1 // pred_check_branch
      %1000 = sbr.rel (0) target = $region45
    $region44: #{shared_gin_forward.1} parent=1 // pred_region
      %1001 = dma.done [#allocation4], 256
    $region45: #{shared_gin_forward.1} parent=1 // pred_fallthru
      _
    // Predicated region
    $region46: #{shared_gin_forward.1} parent=1 // pred_check
      _
    $region47: #{shared_gin_forward.1} parent=1 // pred_check_branch
      %1003 = sbr.rel (0) target = $region49
    $region48: #{shared_gin_forward.1} parent=1 // pred_region
      %1004 = dma.done [#allocation6], 32
    $region49: #{shared_gin_forward.1} parent=1 // pred_fallthru
      _
    %1005 = vsyncpa [#allocation4], 1
    %1006 = vsyncpa [#allocation6], 1

</llo_original>
